<compile_context>
chip_gen: v7x
topology: tpu7x:2x2x1
jax: 0.10.0
libtpu: 0.0.40
codegen_flags: <defaults>
</compile_context>

<pallas_src>
import jax
import jax.numpy as jnp
import numpy as np
from jax.experimental import pallas as pl
from jax.experimental.pallas import tpu as pltpu


def _attention_kernel(emb_ref, tri_ref, w1t_ref, w2t_ref, w3t_ref, b3_ref,
                      w0_ref, out_ref):
    """One grid step: `block_b` batch elements, all L steps vectorized.

    emb_ref     : (block_b, Lp, Ep) f32  embeddings (lane dim padded to 128-mult)
    tri_ref     : (Lp, Lp)          f32  lower-triangular causal mask (0/1)
    w1t/w2t/w3t : (Ep, Ep)          cdt  pre-transposed weights (x @ W^T == x @ Wt)
    b3_ref      : (1, Ep)           f32
    w0_ref      : (1, Ep)           f32
    out_ref     : (block_b, Lp, Ep) f32
    """
    bt, Lp, Ep = emb_ref.shape
    cdt = w1t_ref.dtype                       # matmul compute dtype (bf16 or f32)

    emb = emb_ref[...]                        # (bt, Lp, Ep) f32
    tri = tri_ref[...]                        # (Lp, Lp)     f32

    # ---- Projections on the MXU (f32 accumulation). --------------------------
    # Reshape in f32 first (tile-preserving: Lp % 8 == 0, Ep % 128 == 0), then
    # cast the matmul operands to the compute dtype.
    flat = emb.reshape(bt * Lp, Ep).astype(cdt)
    e1 = jnp.dot(flat, w1t_ref[...], preferred_element_type=jnp.float32)
    e2 = jnp.dot(flat, w2t_ref[...], preferred_element_type=jnp.float32)

    # Cumulative sum over the sequence == lower-triangular batched matmul (MXU).
    csum = jnp.einsum('bij,bje->bie', jnp.broadcast_to(tri, (bt, Lp, Lp)), emb,
                      preferred_element_type=jnp.float32)            # (bt,Lp,Ep)
    e3 = jnp.dot(csum.reshape(bt * Lp, Ep).astype(cdt), w3t_ref[...],
                 preferred_element_type=jnp.float32) + b3_ref[...]   # (bt*Lp,Ep)

    e1 = e1.reshape(bt, Lp, Ep)
    q = (e2 + e3).reshape(bt, Lp, Ep)         # query-side term of step i

    # ---- All-pairs gate + attention factors (no serial loop). ----------------
    # z[b, i, j, :] = sigmoid(q[b, i, :] + e1[b, j, :])
    # NOTE: for large L, tile the i axis here (blocks of ~128) to bound the
    # (bt, Li, L, Ep) intermediate; unnecessary at these sizes.
    z = jax.nn.sigmoid(q[:, :, None, :] + e1[:, None, :, :])         # (bt,Lp,Lp,Ep) f32
    # Score reduction over E (padded lanes of w0 are zero -> contribute 0).
    scores = jnp.sum(z * w0_ref[...], axis=-1)                       # (bt,Lp,Lp) f32

    # ---- Causal mask + weighted history sum: one MXU matmul, one dense store.
    masked = scores * tri[None, :, :]
    out_ref[...] = jnp.einsum('bij,bje->bie', masked, emb,
                              preferred_element_type=jnp.float32)


def attention_net_pallas(emb_lbe, w1, w2, w3, b3, w0, *, block_b=None,
                         use_bf16=True):
    """emb_lbe: (L, B, E). Weights follow nn.Linear conventions.

    Returns (L, B, E) float32 matching AttentionNet.forward(emb).
    """
    L, B, E = emb_lbe.shape
    Lp = pl.cdiv(L, 8) * 8             # sublane-friendly sequence length
    Ep = pl.cdiv(E, 128) * 128         # lane-dense (multiple of 128) feature dim
    cdt = jnp.bfloat16 if use_bf16 else jnp.float32

    if block_b is None:
        # A few batch elements per grid step (amortizes ~0.35us/step grid cost),
        # but keep >= 2 grid steps when B allows so both v7x TCs get work.
        block_b = 1 if B <= 1 else min(8, pl.cdiv(B, 2))
    block_b = max(1, min(block_b, B))
    nb = pl.cdiv(B, block_b)
    Bp = nb * block_b

    # (L, B, E) -> (B, L, E), pad batch / seq / lane dims with zeros.  One fused
    # XLA copy outside the kernel; kept because E must be padded to 128 anyway
    # and the batch-major layout gives the kernel contiguous (Lp, Ep) slabs.
    emb_ble = jnp.transpose(emb_lbe, (1, 0, 2)).astype(jnp.float32)
    emb_p = jnp.pad(emb_ble, ((0, Bp - B), (0, Lp - L), (0, Ep - E)))

    pad2 = ((0, Ep - E), (0, Ep - E))
    w1t = jnp.pad(jnp.transpose(w1), pad2).astype(cdt)
    w2t = jnp.pad(jnp.transpose(w2), pad2).astype(cdt)
    w3t = jnp.pad(jnp.transpose(w3), pad2).astype(cdt)
    b3p = jnp.pad(jnp.reshape(b3, (1, E)), ((0, 0), (0, Ep - E))).astype(jnp.float32)
    w0p = jnp.pad(jnp.reshape(w0, (1, E)), ((0, 0), (0, Ep - E))).astype(jnp.float32)

    # Precomputed causal mask: VMEM-resident across the whole grid
    # (constant index_map), never rebuilt in-kernel.
    tri = jnp.tril(jnp.ones((Lp, Lp), jnp.float32))

    out_p = pl.pallas_call(
        _attention_kernel,
        out_shape=jax.ShapeDtypeStruct((Bp, Lp, Ep), jnp.float32),
        grid_spec=pltpu.PrefetchScalarGridSpec(
            num_scalar_prefetch=0,
            grid=(nb,),
            in_specs=[
                pl.BlockSpec((block_b, Lp, Ep), lambda b: (b, 0, 0)),  # emb (streams)
                pl.BlockSpec((Lp, Lp), lambda b: (0, 0)),              # causal mask
                pl.BlockSpec((Ep, Ep), lambda b: (0, 0)),              # W1^T
                pl.BlockSpec((Ep, Ep), lambda b: (0, 0)),              # W2^T
                pl.BlockSpec((Ep, Ep), lambda b: (0, 0)),              # W3^T
                pl.BlockSpec((1, Ep), lambda b: (0, 0)),               # b3
                pl.BlockSpec((1, Ep), lambda b: (0, 0)),               # w0
            ],
            out_specs=pl.BlockSpec((block_b, Lp, Ep), lambda b: (b, 0, 0)),
        ),
        # VMEM footprint here is < 1 MiB; if L/E scale up, set vmem_limit_bytes
        # explicitly and shrink an i-axis tile first (v7x has only 64 MiB).
        compiler_params=pltpu.CompilerParams(dimension_semantics=("parallel",)),
    )(emb_p, tri, w1t, w2t, w3t, b3p, w0p)

    out = out_p[:B, :L, :E]
    return jnp.transpose(out, (1, 0, 2))                              # (L, B, E)


def attention_net_reference(emb, w1, w2, w3, b3, w0):
    """Pure-JAX reference mirroring the PyTorch forward exactly."""
    L = emb.shape[0]
    e1 = emb @ w1.T
    e2 = emb @ w2.T
    e3 = jnp.cumsum(emb, axis=0) @ w3.T + b3
    outs = []
    for i in range(L):
        z = jax.nn.sigmoid(e1[: i + 1] + e2[i:i + 1] + e3[i:i + 1])   # (i+1, B, E)
        a_i = z @ w0.T                                                # (i+1, B, 1)
        outs.append(jnp.sum(a_i * emb[: i + 1], axis=0, keepdims=True))
    return jnp.concatenate(outs, axis=0)                              # (L, B, E)


if __name__ == "__main__":
    L, B, E = 8, 2, 32

    key = jax.random.PRNGKey(0)
    k_emb, k1, k2, k3, kb3, k0 = jax.random.split(key, 6)

    emb = jax.random.normal(k_emb, (L, B, E), dtype=jnp.float32)
    scale = 1.0 / np.sqrt(E)
    w1 = jax.random.uniform(k1, (E, E), jnp.float32, -scale, scale)
    w2 = jax.random.uniform(k2, (E, E), jnp.float32, -scale, scale)
    w3 = jax.random.uniform(k3, (E, E), jnp.float32, -scale, scale)
    b3 = jax.random.uniform(kb3, (E,), jnp.float32, -scale, scale)
    w0 = jax.random.uniform(k0, (1, E), jnp.float32, -scale, scale)

    ref = jax.block_until_ready(attention_net_reference(emb, w1, w2, w3, b3, w0))

    fn = jax.jit(attention_net_pallas, static_argnames=("block_b", "use_bf16"))

    # f32-matmul configuration: tight correctness check of the kernel structure.
    out_f32 = jax.block_until_ready(fn(emb, w1, w2, w3, b3, w0, use_bf16=False))
    np.testing.assert_allclose(np.asarray(out_f32), np.asarray(ref),
                               rtol=1e-4, atol=1e-4)

    # bf16-matmul configuration (perf default): bf16 projections trade ~1e-2
    # level absolute accuracy for ~2x MXU throughput -> loose sanity tolerance.
    out_bf16 = jax.block_until_ready(fn(emb, w1, w2, w3, b3, w0, use_bf16=True))
    np.testing.assert_allclose(np.asarray(out_bf16), np.asarray(ref),
                               rtol=1e-1, atol=1e-1)

    print("KERNEL_OK")
</pallas_src>

<mosaic_0001>
module attributes {stable_mosaic.version = 11 : i64} {
  func.func @_attention_kernel(%arg0: i32, %arg1: memref<1x8x128xf32, #tpu.memory_space<vmem>>, %arg2: memref<8x8xf32, #tpu.memory_space<vmem>>, %arg3: memref<128x128xf32, #tpu.memory_space<vmem>>, %arg4: memref<128x128xf32, #tpu.memory_space<vmem>>, %arg5: memref<128x128xf32, #tpu.memory_space<vmem>>, %arg6: memref<1x128xf32, #tpu.memory_space<vmem>>, %arg7: memref<1x128xf32, #tpu.memory_space<vmem>>, %arg8: memref<1x8x128xf32, #tpu.memory_space<vmem>>) attributes {dimension_semantics = [#tpu.dimension_semantics<parallel>], iteration_bounds = array<i64: 2>, scalar_prefetch = 0 : i64, scratch_operands = 0 : i64, tpu.core_type = #tpu.core_type<tc>, window_params = [{transform_indices = @transform_0, window_bounds = array<i64: 1, 8, 128>}, {pipeline_mode = #tpu.pipeline_mode<synchronous>, transform_indices = @transform_1, window_bounds = array<i64: 8, 8>}, {pipeline_mode = #tpu.pipeline_mode<synchronous>, transform_indices = @transform_2, window_bounds = array<i64: 128, 128>}, {pipeline_mode = #tpu.pipeline_mode<synchronous>, transform_indices = @transform_3, window_bounds = array<i64: 128, 128>}, {pipeline_mode = #tpu.pipeline_mode<synchronous>, transform_indices = @transform_4, window_bounds = array<i64: 128, 128>}, {pipeline_mode = #tpu.pipeline_mode<synchronous>, transform_indices = @transform_5, window_bounds = array<i64: 1, 128>}, {pipeline_mode = #tpu.pipeline_mode<synchronous>, transform_indices = @transform_6, window_bounds = array<i64: 1, 128>}, {transform_indices = @transform_7, window_bounds = array<i64: 1, 8, 128>}]} {
    %c0 = arith.constant 0 : index
    %c0_0 = arith.constant 0 : index
    %c0_1 = arith.constant 0 : index
    %0 = vector.load %arg1[%c0, %c0_0, %c0_1] : memref<1x8x128xf32, #tpu.memory_space<vmem>>, vector<1x8x128xf32>
    %c0_2 = arith.constant 0 : index
    %c0_3 = arith.constant 0 : index
    %1 = vector.load %arg2[%c0_2, %c0_3] : memref<8x8xf32, #tpu.memory_space<vmem>>, vector<8x8xf32>
    %2 = vector.shape_cast %0 : vector<1x8x128xf32> to vector<8x128xf32>
    %c0_4 = arith.constant 0 : index
    %c0_5 = arith.constant 0 : index
    %3 = vector.load %arg3[%c0_4, %c0_5] : memref<128x128xf32, #tpu.memory_space<vmem>>, vector<128x128xf32>
    %cst = arith.constant dense<0.000000e+00> : vector<8x128xf32>
    %4 = tpu.matmul %2, %3, %cst {dimension_numbers = #tpu.dot_dimension_numbers<[1], [0], [0], [1], [0, 0, 1, 1], [], []>} : vector<8x128xf32>, vector<128x128xf32>, vector<8x128xf32> -> vector<8x128xf32>
    %c0_6 = arith.constant 0 : index
    %c0_7 = arith.constant 0 : index
    %5 = vector.load %arg4[%c0_6, %c0_7] : memref<128x128xf32, #tpu.memory_space<vmem>>, vector<128x128xf32>
    %cst_8 = arith.constant dense<0.000000e+00> : vector<8x128xf32>
    %6 = tpu.matmul %2, %5, %cst_8 {dimension_numbers = #tpu.dot_dimension_numbers<[1], [0], [0], [1], [0, 0, 1, 1], [], []>} : vector<8x128xf32>, vector<128x128xf32>, vector<8x128xf32> -> vector<8x128xf32>
    %7 = vector.shape_cast %1 : vector<8x8xf32> to vector<1x8x8xf32>
    "tpu.trace_start"() <{level = 10 : i32, message = "bij,bje->bie"}> : () -> ()
    %cst_9 = arith.constant dense<0.000000e+00> : vector<1x8x128xf32>
    %8 = tpu.matmul %7, %0, %cst_9 {dimension_numbers = #tpu.dot_dimension_numbers<[2], [1], [1], [2], [0, 0, 0, 1, 1, 2], [0], [0]>} : vector<1x8x8xf32>, vector<1x8x128xf32>, vector<1x8x128xf32> -> vector<1x8x128xf32>
    "tpu.trace_stop"() : () -> ()
    %9 = vector.shape_cast %8 : vector<1x8x128xf32> to vector<8x128xf32>
    %c0_10 = arith.constant 0 : index
    %c0_11 = arith.constant 0 : index
    %10 = vector.load %arg5[%c0_10, %c0_11] : memref<128x128xf32, #tpu.memory_space<vmem>>, vector<128x128xf32>
    %cst_12 = arith.constant dense<0.000000e+00> : vector<8x128xf32>
    %11 = tpu.matmul %9, %10, %cst_12 {dimension_numbers = #tpu.dot_dimension_numbers<[1], [0], [0], [1], [0, 0, 1, 1], [], []>} : vector<8x128xf32>, vector<128x128xf32>, vector<8x128xf32> -> vector<8x128xf32>
    %c0_13 = arith.constant 0 : index
    %c0_14 = arith.constant 0 : index
    %12 = vector.load %arg6[%c0_13, %c0_14] : memref<1x128xf32, #tpu.memory_space<vmem>>, vector<1x128xf32>
    %13 = vector.broadcast %12 : vector<1x128xf32> to vector<8x128xf32>
    %14 = arith.addf %11, %13 : vector<8x128xf32>
    %15 = vector.shape_cast %4 : vector<8x128xf32> to vector<1x8x128xf32>
    %16 = arith.addf %6, %14 : vector<8x128xf32>
    %17 = vector.shape_cast %16 : vector<8x128xf32> to vector<1x8x128xf32>
    %18 = vector.shape_cast %17 : vector<1x8x128xf32> to vector<1x8x1x128xf32>
    %19 = vector.shape_cast %15 : vector<1x8x128xf32> to vector<1x1x8x128xf32>
    %20 = vector.broadcast %18 : vector<1x8x1x128xf32> to vector<1x8x8x128xf32>
    %21 = vector.broadcast %19 : vector<1x1x8x128xf32> to vector<1x8x8x128xf32>
    %22 = arith.addf %20, %21 : vector<1x8x8x128xf32>
    %23 = arith.negf %22 : vector<1x8x8x128xf32>
    %24 = math.exp %23 : vector<1x8x8x128xf32>
    %cst_15 = arith.constant 1.000000e+00 : f32
    %25 = vector.broadcast %cst_15 : f32 to vector<1x8x8x128xf32>
    %26 = arith.addf %25, %24 : vector<1x8x8x128xf32>
    %27 = arith.divf %25, %26 : vector<1x8x8x128xf32>
    %c0_16 = arith.constant 0 : index
    %c0_17 = arith.constant 0 : index
    %28 = vector.load %arg7[%c0_16, %c0_17] : memref<1x128xf32, #tpu.memory_space<vmem>>, vector<1x128xf32>
    %29 = vector.shape_cast %28 : vector<1x128xf32> to vector<1x1x1x128xf32>
    %30 = vector.broadcast %29 : vector<1x1x1x128xf32> to vector<1x8x8x128xf32>
    %31 = arith.mulf %27, %30 : vector<1x8x8x128xf32>
    %cst_18 = arith.constant dense<0.000000e+00> : vector<1x8x8xf32>
    %32 = vector.multi_reduction <add>, %31, %cst_18 [3] : vector<1x8x8x128xf32> to vector<1x8x8xf32>
    %33 = vector.shape_cast %1 : vector<8x8xf32> to vector<1x8x8xf32>
    %34 = arith.mulf %32, %33 : vector<1x8x8xf32>
    "tpu.trace_start"() <{level = 10 : i32, message = "bij,bje->bie"}> : () -> ()
    %cst_19 = arith.constant dense<0.000000e+00> : vector<1x8x128xf32>
    %35 = tpu.matmul %34, %0, %cst_19 {dimension_numbers = #tpu.dot_dimension_numbers<[2], [1], [1], [2], [0, 0, 0, 1, 1, 2], [0], [0]>} : vector<1x8x8xf32>, vector<1x8x128xf32>, vector<1x8x128xf32> -> vector<1x8x128xf32>
    "tpu.trace_stop"() : () -> ()
    %c0_20 = arith.constant 0 : index
    %c0_21 = arith.constant 0 : index
    %c0_22 = arith.constant 0 : index
    %36 = vector.load %arg8[%c0_20, %c0_21, %c0_22] : memref<1x8x128xf32, #tpu.memory_space<vmem>>, vector<1x8x128xf32>
    tpu.vector_store %arg8[%c0_20, %c0_21, %c0_22], %35 {strides = array<i32>} : memref<1x8x128xf32, #tpu.memory_space<vmem>>, vector<1x8x128xf32>,
    return
  }
  func.func @transform_0(%arg0: i32) -> (i32, i32, i32) {
    %c0_i32 = arith.constant 0 : i32
    %c0_i32_0 = arith.constant 0 : i32
    %c0_i32_1 = arith.constant 0 : i32
    return %arg0, %c0_i32, %c0_i32_0 : i32, i32, i32
  }
  func.func @transform_1(%arg0: i32) -> (i32, i32) {
    %c0_i32 = arith.constant 0 : i32
    %c0_i32_0 = arith.constant 0 : i32
    %c0_i32_1 = arith.constant 0 : i32
    return %c0_i32, %c0_i32_0 : i32, i32
  }
  func.func @transform_2(%arg0: i32) -> (i32, i32) {
    %c0_i32 = arith.constant 0 : i32
    %c0_i32_0 = arith.constant 0 : i32
    %c0_i32_1 = arith.constant 0 : i32
    return %c0_i32, %c0_i32_0 : i32, i32
  }
  func.func @transform_3(%arg0: i32) -> (i32, i32) {
    %c0_i32 = arith.constant 0 : i32
    %c0_i32_0 = arith.constant 0 : i32
    %c0_i32_1 = arith.constant 0 : i32
    return %c0_i32, %c0_i32_0 : i32, i32
  }
  func.func @transform_4(%arg0: i32) -> (i32, i32) {
    %c0_i32 = arith.constant 0 : i32
    %c0_i32_0 = arith.constant 0 : i32
    %c0_i32_1 = arith.constant 0 : i32
    return %c0_i32, %c0_i32_0 : i32, i32
  }
  func.func @transform_5(%arg0: i32) -> (i32, i32) {
    %c0_i32 = arith.constant 0 : i32
    %c0_i32_0 = arith.constant 0 : i32
    %c0_i32_1 = arith.constant 0 : i32
    return %c0_i32, %c0_i32_0 : i32, i32
  }
  func.func @transform_6(%arg0: i32) -> (i32, i32) {
    %c0_i32 = arith.constant 0 : i32
    %c0_i32_0 = arith.constant 0 : i32
    %c0_i32_1 = arith.constant 0 : i32
    return %c0_i32, %c0_i32_0 : i32, i32
  }
  func.func @transform_7(%arg0: i32) -> (i32, i32, i32) {
    %c0_i32 = arith.constant 0 : i32
    %c0_i32_0 = arith.constant 0 : i32
    %c0_i32_1 = arith.constant 0 : i32
    return %arg0, %c0_i32, %c0_i32_0 : i32, i32, i32
  }
}

</mosaic_0001>

<llo_original>
// kernel: attention_net_pallas.1
$region0: #{attention_net_pallas.1}
  #allocation0 [shape = 'u32[]', space=smem, size = 0x4, offset = 0x4, fixed_abs, tag = 'smem constant byte address 0x4 - core index']
  #allocation1 [shape = 'u32[144,128]{1,0:T(1,128)}', space=vmem, size = 0x12000, scoped, tag = 'internal scratch']
  %s0 = inlined_call_operand.vmem [shape: f32[2,8,128], index: 0, kind: input, shape index: {}]
  %s1 = inlined_call_operand.vmem [shape: f32[8,8], index: 1, kind: input, shape index: {}]
  %s2 = inlined_call_operand.vmem [shape: f32[128,128], index: 2, kind: input, shape index: {}]
  %s3 = inlined_call_operand.vmem [shape: f32[128,128], index: 3, kind: input, shape index: {}]
  %s4 = inlined_call_operand.vmem [shape: f32[128,128], index: 4, kind: input, shape index: {}]
  %s5 = inlined_call_operand.vmem [shape: f32[1,128], index: 5, kind: input, shape index: {}]
  %s6 = inlined_call_operand.vmem [shape: f32[1,128], index: 6, kind: input, shape index: {}]
  %s7 = inlined_call_operand.vmem [shape: f32[2,8,128], index: 7, kind: output, shape index: {}]
  %s8 = sld [smem:[#allocation0]]
  $region61: #{attention_net_pallas.1} parent=0
    _
  %s10 = ssub.s32 1, %s8
  %s11 = scalar_select 0, %s10, %s8
  loop: start=0, step=1, limit=4
  $region2: #{attention_net_pallas.1} parent=0 // loop_pre_header
    _
  $region3: #{attention_net_pallas.1} parent=0 // loop_header
    %s13 = sphi 0, %s17
    %p14 = scmp.ge.s32.totalorder %s13, 4
    %s23 = sphi 0, %s25
    %s26 = sphi 0, %s23
    %s27 = sphi 0, %s26
    %s43 = sphi 0, %s27
    %s47 = sphi 0, %s47
    %s49 = sphi 0, %s47
    %s50 = sphi 0, %s49
    %s64 = sphi 0, %s50
    %s68 = sphi 0, %s68
    %s70 = sphi 0, %s68
    %s71 = sphi 0, %s70
    %s85 = sphi 0, %s71
    %s89 = sphi 0, %s89
    %s91 = sphi 0, %s89
    %s92 = sphi 0, %s91
    %s106 = sphi 0, %s92
    %s110 = sphi 0, %s110
    %s112 = sphi 0, %s110
    %s113 = sphi 0, %s112
    %s127 = sphi 0, %s113
    %s131 = sphi 0, %s131
    %s133 = sphi 0, %s131
    %s134 = sphi 0, %s133
    %s148 = sphi 0, %s134
    %s152 = sphi 0, %s152
    %s154 = sphi 0, %s152
    %s155 = sphi 0, %s154
    %s169 = sphi 0, %s155
    %s175 = sphi 0, %s177
    %s178 = sphi 0, %s175
    %s179 = sphi 0, %s178
    %s195 = sphi 0, %s179
  $region4: #{attention_net_pallas.1} parent=0 // loop_header_branch
    %16 = sbr.rel (%p14) target = $region8
  $region5: #{attention_net_pallas.1} parent=0 // loop_body
    %s18 = ssub.s32 %s13, 1
    %s19 = ssub.s32 %s13, 2
    %s20 = sadd.s32 %s13, 1
    %s21 = ssub.s32 %s13, %s20
    %p22 = scmp.eq.s32.totalorder %s21, 0
    %s24 = sadd.s32 %s23, 1
    %s25 = scalar_select %p22, %s23, %s24
    %p28 = pneg %p22
    %p29 = scmp.eq.s32.totalorder %s13, 1
    %p30 = por %p28, %p29
    %p31 = scmp.ne.s32.totalorder %s23, %s26
    %p32 = scmp.eq.s32.totalorder %s13, 0
    %p33 = por %p31, %p32
    %p34 = scmp.ne.s32.totalorder %s23, %s26
    %p35 = scmp.eq.s32.totalorder %s18, 1
    %p36 = por %p34, %p35
    %p37 = scmp.ne.s32.totalorder %s26, %s27
    %p38 = scmp.eq.s32.totalorder %s18, 0
    %p39 = por %p37, %p38
    %p40 = scmp.ne.s32.totalorder %s26, %s27
    %p41 = scmp.eq.s32.totalorder %s19, 1
    %p42 = por %p40, %p41
    %p44 = scmp.ne.s32.totalorder %s27, %s43
    %p45 = scmp.eq.s32.totalorder %s19, 0
    %p46 = por %p44, %p45
    %s48 = sadd.s32 %s47, 1
    %p51 = scmp.eq.s32.totalorder %s13, 1
    %p52 = scmp.ne.s32.totalorder %s47, %s49
    %p53 = scmp.eq.s32.totalorder %s13, 0
    %p54 = por %p52, %p53
    %p55 = scmp.ne.s32.totalorder %s47, %s49
    %p56 = scmp.eq.s32.totalorder %s18, 1
    %p57 = por %p55, %p56
    %p58 = scmp.ne.s32.totalorder %s49, %s50
    %p59 = scmp.eq.s32.totalorder %s18, 0
    %p60 = por %p58, %p59
    %p61 = scmp.ne.s32.totalorder %s49, %s50
    %p62 = scmp.eq.s32.totalorder %s19, 1
    %p63 = por %p61, %p62
    %p65 = scmp.ne.s32.totalorder %s50, %s64
    %p66 = scmp.eq.s32.totalorder %s19, 0
    %p67 = por %p65, %p66
    %s69 = sadd.s32 %s68, 1
    %p72 = scmp.eq.s32.totalorder %s13, 1
    %p73 = scmp.ne.s32.totalorder %s68, %s70
    %p74 = scmp.eq.s32.totalorder %s13, 0
    %p75 = por %p73, %p74
    %p76 = scmp.ne.s32.totalorder %s68, %s70
    %p77 = scmp.eq.s32.totalorder %s18, 1
    %p78 = por %p76, %p77
    %p79 = scmp.ne.s32.totalorder %s70, %s71
    %p80 = scmp.eq.s32.totalorder %s18, 0
    %p81 = por %p79, %p80
    %p82 = scmp.ne.s32.totalorder %s70, %s71
    %p83 = scmp.eq.s32.totalorder %s19, 1
    %p84 = por %p82, %p83
    %p86 = scmp.ne.s32.totalorder %s71, %s85
    %p87 = scmp.eq.s32.totalorder %s19, 0
    %p88 = por %p86, %p87
    %s90 = sadd.s32 %s89, 1
    %p93 = scmp.eq.s32.totalorder %s13, 1
    %p94 = scmp.ne.s32.totalorder %s89, %s91
    %p95 = scmp.eq.s32.totalorder %s13, 0
    %p96 = por %p94, %p95
    %p97 = scmp.ne.s32.totalorder %s89, %s91
    %p98 = scmp.eq.s32.totalorder %s18, 1
    %p99 = por %p97, %p98
    %p100 = scmp.ne.s32.totalorder %s91, %s92
    %p101 = scmp.eq.s32.totalorder %s18, 0
    %p102 = por %p100, %p101
    %p103 = scmp.ne.s32.totalorder %s91, %s92
    %p104 = scmp.eq.s32.totalorder %s19, 1
    %p105 = por %p103, %p104
    %p107 = scmp.ne.s32.totalorder %s92, %s106
    %p108 = scmp.eq.s32.totalorder %s19, 0
    %p109 = por %p107, %p108
    %s111 = sadd.s32 %s110, 1
    %p114 = scmp.eq.s32.totalorder %s13, 1
    %p115 = scmp.ne.s32.totalorder %s110, %s112
    %p116 = scmp.eq.s32.totalorder %s13, 0
    %p117 = por %p115, %p116
    %p118 = scmp.ne.s32.totalorder %s110, %s112
    %p119 = scmp.eq.s32.totalorder %s18, 1
    %p120 = por %p118, %p119
    %p121 = scmp.ne.s32.totalorder %s112, %s113
    %p122 = scmp.eq.s32.totalorder %s18, 0
    %p123 = por %p121, %p122
    %p124 = scmp.ne.s32.totalorder %s112, %s113
    %p125 = scmp.eq.s32.totalorder %s19, 1
    %p126 = por %p124, %p125
    %p128 = scmp.ne.s32.totalorder %s113, %s127
    %p129 = scmp.eq.s32.totalorder %s19, 0
    %p130 = por %p128, %p129
    %s132 = sadd.s32 %s131, 1
    %p135 = scmp.eq.s32.totalorder %s13, 1
    %p136 = scmp.ne.s32.totalorder %s131, %s133
    %p137 = scmp.eq.s32.totalorder %s13, 0
    %p138 = por %p136, %p137
    %p139 = scmp.ne.s32.totalorder %s131, %s133
    %p140 = scmp.eq.s32.totalorder %s18, 1
    %p141 = por %p139, %p140
    %p142 = scmp.ne.s32.totalorder %s133, %s134
    %p143 = scmp.eq.s32.totalorder %s18, 0
    %p144 = por %p142, %p143
    %p145 = scmp.ne.s32.totalorder %s133, %s134
    %p146 = scmp.eq.s32.totalorder %s19, 1
    %p147 = por %p145, %p146
    %p149 = scmp.ne.s32.totalorder %s134, %s148
    %p150 = scmp.eq.s32.totalorder %s19, 0
    %p151 = por %p149, %p150
    %s153 = sadd.s32 %s152, 1
    %p156 = scmp.eq.s32.totalorder %s13, 1
    %p157 = scmp.ne.s32.totalorder %s152, %s154
    %p158 = scmp.eq.s32.totalorder %s13, 0
    %p159 = por %p157, %p158
    %p160 = scmp.ne.s32.totalorder %s152, %s154
    %p161 = scmp.eq.s32.totalorder %s18, 1
    %p162 = por %p160, %p161
    %p163 = scmp.ne.s32.totalorder %s154, %s155
    %p164 = scmp.eq.s32.totalorder %s18, 0
    %p165 = por %p163, %p164
    %p166 = scmp.ne.s32.totalorder %s154, %s155
    %p167 = scmp.eq.s32.totalorder %s19, 1
    %p168 = por %p166, %p167
    %p170 = scmp.ne.s32.totalorder %s155, %s169
    %p171 = scmp.eq.s32.totalorder %s19, 0
    %p172 = por %p170, %p171
    %s173 = ssub.s32 %s13, %s20
    %p174 = scmp.eq.s32.totalorder %s173, 0
    %s176 = sadd.s32 %s175, 1
    %s177 = scalar_select %p174, %s175, %s176
    %p180 = pneg %p174
    %p181 = scmp.eq.s32.totalorder %s13, 1
    %p182 = por %p180, %p181
    %p183 = scmp.ne.s32.totalorder %s175, %s178
    %p184 = scmp.eq.s32.totalorder %s13, 0
    %p185 = por %p183, %p184
    %p186 = scmp.ne.s32.totalorder %s175, %s178
    %p187 = scmp.eq.s32.totalorder %s18, 1
    %p188 = por %p186, %p187
    %p189 = scmp.ne.s32.totalorder %s178, %s179
    %p190 = scmp.eq.s32.totalorder %s18, 0
    %p191 = por %p189, %p190
    %p192 = scmp.ne.s32.totalorder %s178, %s179
    %p193 = scmp.eq.s32.totalorder %s19, 1
    %p194 = por %p192, %p193
    %p196 = scmp.ne.s32.totalorder %s179, %s195
    %p197 = scmp.eq.s32.totalorder %s19, 0
    %p198 = por %p196, %p197
    %p199 = scmp.le.s32.totalorder 1, %s13
    %p200 = scmp.lt.s32.totalorder %s13, 3
    %p201 = pnand %p199, %p200
    %p202 = pneg %p201
    // Predicated region
    $region9: #{attention_net_pallas.1} parent=5 // pred_check
      _
    $region10: #{attention_net_pallas.1} parent=5 // pred_check_branch
      %204 = sbr.rel (%p201) target = $region12
    $region11: #{attention_net_pallas.1} parent=5 // pred_region
      %s205 = ssub.s32 %s13, 1
      // Predicated region
      $region13: #{attention_net_pallas.1} parent=11 // pred_check
        %p206 = pneg %p60
      $region14: #{attention_net_pallas.1} parent=11 // pred_check_branch
        %208 = sbr.rel (%p206) target = $region16
      $region15: #{attention_net_pallas.1} parent=11 // pred_region
        _
      $region16: #{attention_net_pallas.1} parent=11 // pred_fallthru
        _
      // Predicated region
      $region17: #{attention_net_pallas.1} parent=11 // pred_check
        %p209 = pneg %p81
      $region18: #{attention_net_pallas.1} parent=11 // pred_check_branch
        %211 = sbr.rel (%p209) target = $region20
      $region19: #{attention_net_pallas.1} parent=11 // pred_region
        _
      $region20: #{attention_net_pallas.1} parent=11 // pred_fallthru
        _
      // Predicated region
      $region21: #{attention_net_pallas.1} parent=11 // pred_check
        %p212 = pneg %p102
      $region22: #{attention_net_pallas.1} parent=11 // pred_check_branch
        %214 = sbr.rel (%p212) target = $region24
      $region23: #{attention_net_pallas.1} parent=11 // pred_region
        _
      $region24: #{attention_net_pallas.1} parent=11 // pred_fallthru
        _
      // Predicated region
      $region25: #{attention_net_pallas.1} parent=11 // pred_check
        %p215 = pneg %p123
      $region26: #{attention_net_pallas.1} parent=11 // pred_check_branch
        %217 = sbr.rel (%p215) target = $region28
      $region27: #{attention_net_pallas.1} parent=11 // pred_region
        _
      $region28: #{attention_net_pallas.1} parent=11 // pred_fallthru
        _
      // Predicated region
      $region29: #{attention_net_pallas.1} parent=11 // pred_check
        %p218 = pneg %p144
      $region30: #{attention_net_pallas.1} parent=11 // pred_check_branch
        %220 = sbr.rel (%p218) target = $region32
      $region31: #{attention_net_pallas.1} parent=11 // pred_region
        _
      $region32: #{attention_net_pallas.1} parent=11 // pred_fallthru
        _
      // Predicated region
      $region33: #{attention_net_pallas.1} parent=11 // pred_check
        %p221 = pneg %p165
      $region34: #{attention_net_pallas.1} parent=11 // pred_check_branch
        %223 = sbr.rel (%p221) target = $region36
      $region35: #{attention_net_pallas.1} parent=11 // pred_region
        _
      $region36: #{attention_net_pallas.1} parent=11 // pred_fallthru
        _
    $region12: #{attention_net_pallas.1} parent=5 // pred_fallthru
      _
    %p224 = scmp.lt.s32.totalorder %s13, 2
    // Predicated region
    $region37: #{attention_net_pallas.1} parent=5 // pred_check
      %p225 = pneg %p224
    $region38: #{attention_net_pallas.1} parent=5 // pred_check_branch
      %227 = sbr.rel (%p225) target = $region40
    $region39: #{attention_net_pallas.1} parent=5 // pred_region
      // Predicated region
      $region41: #{attention_net_pallas.1} parent=39 // pred_check
        %p228 = pneg %p33
      $region42: #{attention_net_pallas.1} parent=39 // pred_check_branch
        %230 = sbr.rel (%p228) target = $region44
      $region43: #{attention_net_pallas.1} parent=39 // pred_region
        %p231 = scmp.lt.s32.totalorder %s13, 1
        %s232 = scalar_select %p231, %s13, 1
        %s233 = smul.addr %s232, 8
        %s234 = scalar_lea.vmem %s0, %s233
      $region44: #{attention_net_pallas.1} parent=39 // pred_fallthru
        _
    $region40: #{attention_net_pallas.1} parent=5 // pred_fallthru
      _
    %p235 = scmp.le.s32.totalorder 1, %s13
    %p236 = scmp.lt.s32.totalorder %s13, 3
    %p237 = pnand %p235, %p236
    %p238 = pneg %p237
    // Predicated region
    $region45: #{attention_net_pallas.1} parent=5 // pred_check
      _
    $region46: #{attention_net_pallas.1} parent=5 // pred_check_branch
      %240 = sbr.rel (%p237) target = $region48
    $region47: #{attention_net_pallas.1} parent=5 // pred_region
      %s241 = ssub.s32 %s13, 1
      %p242 = scmp.lt.s32.totalorder %s18, 1
      %s243 = scalar_select %p242, %s18, 1
      %s244 = smul.addr %s243, 8
      %s245 = scalar_lea.vmem %s0, %s244
      %p246 = pneg %p39
      %p247 = pneg %p36
      %p248 = pneg %p60
      %p249 = pneg %p57
      %p250 = pneg %p81
      %p251 = pneg %p78
      %p252 = pneg %p102
      %p253 = pneg %p99
      %p254 = pneg %p123
      %p255 = pneg %p120
      %p256 = pneg %p144
      %p257 = pneg %p141
      %p258 = pneg %p165
      %p259 = pneg %p162
      %p260 = pneg %p191
      %p261 = pneg %p188
      %p262 = scmp.lt.s32.totalorder %s18, 1
      %s263 = scalar_select %p262, %s18, 1
      %s264 = smul.addr %s263, 8
      %s265 = scalar_lea.vmem %s7, %s264
      %p266 = scmp.lt.s32.totalorder %s18, 1
      %s267 = scalar_select %p266, %s18, 1
      %s268 = smul.addr %s267, 8
      %s269 = scalar_lea.vmem %s0, %s268
      %p270 = scmp.lt.s32.totalorder %s18, 1
      %s271 = scalar_select %p270, %s18, 1
      %s272 = smul.addr %s271, 8
      %s273 = scalar_lea.vmem %s7, %s272
      %v274 = vld [vmem:[%s269] sm:$0xff]
      %v275 = vld [vmem:[%s1] sm:$0xff]
      %v276 = vld [vmem:[%s2] sm:$0xff]
      %v277 = vld [vmem:[%s2 + $0x8] sm:$0xff]
      %v278 = vld [vmem:[%s2 + $0x10] sm:$0xff]
      %v279 = vld [vmem:[%s2 + $0x18] sm:$0xff]
      %v280 = vld [vmem:[%s2 + $0x20] sm:$0xff]
      %v281 = vld [vmem:[%s2 + $0x28] sm:$0xff]
      %v282 = vld [vmem:[%s2 + $0x30] sm:$0xff]
      %v283 = vld [vmem:[%s2 + $0x38] sm:$0xff]
      %v284 = vld [vmem:[%s2 + $0x40] sm:$0xff]
      %v285 = vld [vmem:[%s2 + $0x48] sm:$0xff]
      %v286 = vld [vmem:[%s2 + $0x50] sm:$0xff]
      %v287 = vld [vmem:[%s2 + $0x58] sm:$0xff]
      %v288 = vld [vmem:[%s2 + $0x60] sm:$0xff]
      %v289 = vld [vmem:[%s2 + $0x68] sm:$0xff]
      %v290 = vld [vmem:[%s2 + $0x70] sm:$0xff]
      %v291 = vld [vmem:[%s2 + $0x78] sm:$0xff]
      %292 = vmatprep.subr.mxu0 0.0
      %293 = vmatpush1.msra.mxu0 %v276
      %294 = vmatprep.subr.mxu0 0.0
      %295 = vmatpush1.msra.mxu0 %v277
      %296 = vmatprep.subr.mxu0 0.0
      %297 = vmatpush1.msra.mxu0 %v278
      %298 = vmatprep.subr.mxu0 0.0
      %299 = vmatpush1.msra.mxu0 %v279
      %300 = vmatprep.subr.mxu0 0.0
      %301 = vmatpush1.msra.mxu0 %v280
      %302 = vmatprep.subr.mxu0 0.0
      %303 = vmatpush1.msra.mxu0 %v281
      %304 = vmatprep.subr.mxu0 0.0
      %305 = vmatpush1.msra.mxu0 %v282
      %306 = vmatprep.subr.mxu0 0.0
      %307 = vmatpush1.msra.mxu0 %v283
      %308 = vmatprep.subr.mxu0 0.0
      %309 = vmatpush1.msra.mxu0 %v284
      %310 = vmatprep.subr.mxu0 0.0
      %311 = vmatpush1.msra.mxu0 %v285
      %312 = vmatprep.subr.mxu0 0.0
      %313 = vmatpush1.msra.mxu0 %v286
      %314 = vmatprep.subr.mxu0 0.0
      %315 = vmatpush1.msra.mxu0 %v287
      %316 = vmatprep.subr.mxu0 0.0
      %317 = vmatpush1.msra.mxu0 %v288
      %318 = vmatprep.subr.mxu0 0.0
      %319 = vmatpush1.msra.mxu0 %v289
      %320 = vmatprep.subr.mxu0 0.0
      %321 = vmatpush1.msra.mxu0 %v290
      %322 = vmatprep.subr.mxu0 0.0
      %323 = vmatpush1.msra.mxu0 %v291
      %324 = vmatprep.subr.mxu0 0.0
      %325 = vmatpush1.msra.mxu0 0.0
      %326 = vmatprep.subr.mxu0 0.0
      %327 = vmatpush1.msra.mxu0 0.0
      %328 = vmatprep.subr.mxu0 0.0
      %329 = vmatpush1.msra.mxu0 0.0
      %330 = vmatprep.subr.mxu0 0.0
      %331 = vmatpush1.msra.mxu0 0.0
      %332 = vmatprep.subr.mxu0 0.0
      %333 = vmatpush1.msra.mxu0 0.0
      %334 = vmatprep.subr.mxu0 0.0
      %335 = vmatpush1.msra.mxu0 0.0
      %336 = vmatprep.subr.mxu0 0.0
      %337 = vmatpush1.msra.mxu0 0.0
      %338 = vmatprep.subr.mxu0 0.0
      %339 = vmatpush1.msra.mxu0 0.0
      %340 = vmatprep.subr.mxu0 0.0
      %341 = vmatpush1.msra.mxu0 0.0
      %342 = vmatprep.subr.mxu0 0.0
      %343 = vmatpush1.msra.mxu0 0.0
      %344 = vmatprep.subr.mxu0 0.0
      %345 = vmatpush1.msra.mxu0 0.0
      %346 = vmatprep.subr.mxu0 0.0
      %347 = vmatpush1.msra.mxu0 0.0
      %348 = vmatprep.subr.mxu0 0.0
      %349 = vmatpush1.msra.mxu0 0.0
      %350 = vmatprep.subr.mxu0 0.0
      %351 = vmatpush1.msra.mxu0 0.0
      %352 = vmatprep.subr.mxu0 0.0
      %353 = vmatpush1.msra.mxu0 0.0
      %354 = vmatprep.subr.mxu0 0.0
      %355 = vmatpush1.msra.mxu0 0.0
      %356 = vmatprep.mubr.f32.mxu0 0.0
      %357 = vmatmul.mubr.f32.gmra.mrb[0].mxu0 %v274
      %v358 = vpop.f32.mrb[0].mxu0
      %v359 = vadd.f32 0.0, %v358
      %v360 = vpop.f32.mrb[0].mxu0
      %361 = vdwg.mxu0
      %v362 = vld [vmem:[%s3] sm:$0xff]
      %v363 = vld [vmem:[%s3 + $0x8] sm:$0xff]
      %v364 = vld [vmem:[%s3 + $0x10] sm:$0xff]
      %v365 = vld [vmem:[%s3 + $0x18] sm:$0xff]
      %v366 = vld [vmem:[%s3 + $0x20] sm:$0xff]
      %v367 = vld [vmem:[%s3 + $0x28] sm:$0xff]
      %v368 = vld [vmem:[%s3 + $0x30] sm:$0xff]
      %v369 = vld [vmem:[%s3 + $0x38] sm:$0xff]
      %v370 = vld [vmem:[%s3 + $0x40] sm:$0xff]
      %v371 = vld [vmem:[%s3 + $0x48] sm:$0xff]
      %v372 = vld [vmem:[%s3 + $0x50] sm:$0xff]
      %v373 = vld [vmem:[%s3 + $0x58] sm:$0xff]
      %v374 = vld [vmem:[%s3 + $0x60] sm:$0xff]
      %v375 = vld [vmem:[%s3 + $0x68] sm:$0xff]
      %v376 = vld [vmem:[%s3 + $0x70] sm:$0xff]
      %v377 = vld [vmem:[%s3 + $0x78] sm:$0xff]
      %vm378 = vcmask 64512
      %v380 = vsel %vm378, %v275, 0
      %382 = vmatprep.subr.mxu0 0.0
      %383 = vmatpush1.msra.mxu0 %v274
      %384 = vmatprep.subr.mxu0 0.0
      %385 = vmatpush1.msra.mxu0 0.0
      %386 = vmatprep.subr.mxu0 0.0
      %387 = vmatpush1.msra.mxu0 0.0
      %388 = vmatprep.subr.mxu0 0.0
      %389 = vmatpush1.msra.mxu0 0.0
      %390 = vmatprep.subr.mxu0 0.0
      %391 = vmatpush1.msra.mxu0 0.0
      %392 = vmatprep.subr.mxu0 0.0
      %393 = vmatpush1.msra.mxu0 0.0
      %394 = vmatprep.subr.mxu0 0.0
      %395 = vmatpush1.msra.mxu0 0.0
      %396 = vmatprep.subr.mxu0 0.0
      %397 = vmatpush1.msra.mxu0 0.0
      %398 = vmatprep.subr.mxu0 0.0
      %399 = vmatpush1.msra.mxu0 0.0
      %400 = vmatprep.subr.mxu0 0.0
      %401 = vmatpush1.msra.mxu0 0.0
      %402 = vmatprep.subr.mxu0 0.0
      %403 = vmatpush1.msra.mxu0 0.0
      %404 = vmatprep.subr.mxu0 0.0
      %405 = vmatpush1.msra.mxu0 0.0
      %406 = vmatprep.subr.mxu0 0.0
      %407 = vmatpush1.msra.mxu0 0.0
      %408 = vmatprep.subr.mxu0 0.0
      %409 = vmatpush1.msra.mxu0 0.0
      %410 = vmatprep.subr.mxu0 0.0
      %411 = vmatpush1.msra.mxu0 0.0
      %412 = vmatprep.subr.mxu0 0.0
      %413 = vmatpush1.msra.mxu0 0.0
      %414 = vmatprep.subr.mxu0 0.0
      %415 = vmatpush1.msra.mxu0 0.0
      %416 = vmatprep.subr.mxu0 0.0
      %417 = vmatpush1.msra.mxu0 0.0
      %418 = vmatprep.subr.mxu0 0.0
      %419 = vmatpush1.msra.mxu0 0.0
      %420 = vmatprep.subr.mxu0 0.0
      %421 = vmatpush1.msra.mxu0 0.0
      %422 = vmatprep.subr.mxu0 0.0
      %423 = vmatpush1.msra.mxu0 0.0
      %424 = vmatprep.subr.mxu0 0.0
      %425 = vmatpush1.msra.mxu0 0.0
      %426 = vmatprep.subr.mxu0 0.0
      %427 = vmatpush1.msra.mxu0 0.0
      %428 = vmatprep.subr.mxu0 0.0
      %429 = vmatpush1.msra.mxu0 0.0
      %430 = vmatprep.subr.mxu0 0.0
      %431 = vmatpush1.msra.mxu0 0.0
      %432 = vmatprep.subr.mxu0 0.0
      %433 = vmatpush1.msra.mxu0 0.0
      %434 = vmatprep.subr.mxu0 0.0
      %435 = vmatpush1.msra.mxu0 0.0
      %436 = vmatprep.subr.mxu0 0.0
      %437 = vmatpush1.msra.mxu0 0.0
      %438 = vmatprep.subr.mxu0 0.0
      %439 = vmatpush1.msra.mxu0 0.0
      %440 = vmatprep.subr.mxu0 0.0
      %441 = vmatpush1.msra.mxu0 0.0
      %442 = vmatprep.subr.mxu0 0.0
      %443 = vmatpush1.msra.mxu0 0.0
      %444 = vmatprep.subr.mxu0 0.0
      %445 = vmatpush1.msra.mxu0 0.0
      %446 = vmatprep.mubr.f32.mxu0 0.0
      %447 = vmatmul.mubr.f32.gmra.mrb[0].mxu0 %v380
      %v448 = vpop.f32.mrb[0].mxu0
      %v449 = vadd.f32 0.0, %v448
      %v450 = vpop.f32.mrb[0].mxu0
      %451 = vdwg.mxu0
      %v452 = vld [vmem:[%s4] sm:$0xff]
      %v453 = vld [vmem:[%s4 + $0x8] sm:$0xff]
      %v454 = vld [vmem:[%s4 + $0x10] sm:$0xff]
      %v455 = vld [vmem:[%s4 + $0x18] sm:$0xff]
      %v456 = vld [vmem:[%s4 + $0x20] sm:$0xff]
      %v457 = vld [vmem:[%s4 + $0x28] sm:$0xff]
      %v458 = vld [vmem:[%s4 + $0x30] sm:$0xff]
      %v459 = vld [vmem:[%s4 + $0x38] sm:$0xff]
      %v460 = vld [vmem:[%s4 + $0x40] sm:$0xff]
      %v461 = vld [vmem:[%s4 + $0x48] sm:$0xff]
      %v462 = vld [vmem:[%s4 + $0x50] sm:$0xff]
      %v463 = vld [vmem:[%s4 + $0x58] sm:$0xff]
      %v464 = vld [vmem:[%s4 + $0x60] sm:$0xff]
      %v465 = vld [vmem:[%s4 + $0x68] sm:$0xff]
      %v466 = vld [vmem:[%s4 + $0x70] sm:$0xff]
      %v467 = vld [vmem:[%s4 + $0x78] sm:$0xff]
      %v468 = vld [vmem:[%s5] sm:$0x1]
      %v470 = vlaneseq
      %v471 = vshrl.u32 %v470, 7
      %v472 = vsub.s32 0, %v471
      %v473 = vrot.slane %v468, %v472
      %475 = vmatprep.subr.mxu0 0.0
      %476 = vmatpush1.msra.mxu0 %v452
      %477 = vmatprep.subr.mxu0 0.0
      %478 = vmatpush1.msra.mxu0 %v453
      %479 = vmatprep.subr.mxu0 0.0
      %480 = vmatpush1.msra.mxu0 %v454
      %481 = vmatprep.subr.mxu0 0.0
      %482 = vmatpush1.msra.mxu0 %v455
      %483 = vmatprep.subr.mxu0 0.0
      %484 = vmatpush1.msra.mxu0 %v456
      %485 = vmatprep.subr.mxu0 0.0
      %486 = vmatpush1.msra.mxu0 %v457
      %487 = vmatprep.subr.mxu0 0.0
      %488 = vmatpush1.msra.mxu0 %v458
      %489 = vmatprep.subr.mxu0 0.0
      %490 = vmatpush1.msra.mxu0 %v459
      %491 = vmatprep.subr.mxu0 0.0
      %492 = vmatpush1.msra.mxu0 %v460
      %493 = vmatprep.subr.mxu0 0.0
      %494 = vmatpush1.msra.mxu0 %v461
      %495 = vmatprep.subr.mxu0 0.0
      %496 = vmatpush1.msra.mxu0 %v462
      %497 = vmatprep.subr.mxu0 0.0
      %498 = vmatpush1.msra.mxu0 %v463
      %499 = vmatprep.subr.mxu0 0.0
      %500 = vmatpush1.msra.mxu0 %v464
      %501 = vmatprep.subr.mxu0 0.0
      %502 = vmatpush1.msra.mxu0 %v465
      %503 = vmatprep.subr.mxu0 0.0
      %504 = vmatpush1.msra.mxu0 %v466
      %505 = vmatprep.subr.mxu0 0.0
      %506 = vmatpush1.msra.mxu0 %v467
      %507 = vmatprep.subr.mxu0 0.0
      %508 = vmatpush1.msra.mxu0 0.0
      %509 = vmatprep.subr.mxu0 0.0
      %510 = vmatpush1.msra.mxu0 0.0
      %511 = vmatprep.subr.mxu0 0.0
      %512 = vmatpush1.msra.mxu0 0.0
      %513 = vmatprep.subr.mxu0 0.0
      %514 = vmatpush1.msra.mxu0 0.0
      %515 = vmatprep.subr.mxu0 0.0
      %516 = vmatpush1.msra.mxu0 0.0
      %517 = vmatprep.subr.mxu0 0.0
      %518 = vmatpush1.msra.mxu0 0.0
      %519 = vmatprep.subr.mxu0 0.0
      %520 = vmatpush1.msra.mxu0 0.0
      %521 = vmatprep.subr.mxu0 0.0
      %522 = vmatpush1.msra.mxu0 0.0
      %523 = vmatprep.subr.mxu0 0.0
      %524 = vmatpush1.msra.mxu0 0.0
      %525 = vmatprep.subr.mxu0 0.0
      %526 = vmatpush1.msra.mxu0 0.0
      %527 = vmatprep.subr.mxu0 0.0
      %528 = vmatpush1.msra.mxu0 0.0
      %529 = vmatprep.subr.mxu0 0.0
      %530 = vmatpush1.msra.mxu0 0.0
      %531 = vmatprep.subr.mxu0 0.0
      %532 = vmatpush1.msra.mxu0 0.0
      %533 = vmatprep.subr.mxu0 0.0
      %534 = vmatpush1.msra.mxu0 0.0
      %535 = vmatprep.subr.mxu0 0.0
      %536 = vmatpush1.msra.mxu0 0.0
      %537 = vmatprep.subr.mxu0 0.0
      %538 = vmatpush1.msra.mxu0 0.0
      %539 = vmatprep.mubr.f32.mxu0 0.0
      %540 = vmatmul.mubr.f32.gmra.mrb[0].mxu0 %v449
      %v541 = vpop.f32.mrb[0].mxu0
      %v542 = vadd.f32 %v473, %v541
      %v543 = vpop.f32.mrb[0].mxu0
      %544 = vdwg.mxu0
      %545 = vmatprep.subr.mxu0 0.0
      %546 = vmatpush1.msra.mxu0 %v362
      %547 = vmatprep.subr.mxu0 0.0
      %548 = vmatpush1.msra.mxu0 %v363
      %549 = vmatprep.subr.mxu0 0.0
      %550 = vmatpush1.msra.mxu0 %v364
      %551 = vmatprep.subr.mxu0 0.0
      %552 = vmatpush1.msra.mxu0 %v365
      %553 = vmatprep.subr.mxu0 0.0
      %554 = vmatpush1.msra.mxu0 %v366
      %555 = vmatprep.subr.mxu0 0.0
      %556 = vmatpush1.msra.mxu0 %v367
      %557 = vmatprep.subr.mxu0 0.0
      %558 = vmatpush1.msra.mxu0 %v368
      %559 = vmatprep.subr.mxu0 0.0
      %560 = vmatpush1.msra.mxu0 %v369
      %561 = vmatprep.subr.mxu0 0.0
      %562 = vmatpush1.msra.mxu0 %v370
      %563 = vmatprep.subr.mxu0 0.0
      %564 = vmatpush1.msra.mxu0 %v371
      %565 = vmatprep.subr.mxu0 0.0
      %566 = vmatpush1.msra.mxu0 %v372
      %567 = vmatprep.subr.mxu0 0.0
      %568 = vmatpush1.msra.mxu0 %v373
      %569 = vmatprep.subr.mxu0 0.0
      %570 = vmatpush1.msra.mxu0 %v374
      %571 = vmatprep.subr.mxu0 0.0
      %572 = vmatpush1.msra.mxu0 %v375
      %573 = vmatprep.subr.mxu0 0.0
      %574 = vmatpush1.msra.mxu0 %v376
      %575 = vmatprep.subr.mxu0 0.0
      %576 = vmatpush1.msra.mxu0 %v377
      %577 = vmatprep.subr.mxu0 0.0
      %578 = vmatpush1.msra.mxu0 0.0
      %579 = vmatprep.subr.mxu0 0.0
      %580 = vmatpush1.msra.mxu0 0.0
      %581 = vmatprep.subr.mxu0 0.0
      %582 = vmatpush1.msra.mxu0 0.0
      %583 = vmatprep.subr.mxu0 0.0
      %584 = vmatpush1.msra.mxu0 0.0
      %585 = vmatprep.subr.mxu0 0.0
      %586 = vmatpush1.msra.mxu0 0.0
      %587 = vmatprep.subr.mxu0 0.0
      %588 = vmatpush1.msra.mxu0 0.0
      %589 = vmatprep.subr.mxu0 0.0
      %590 = vmatpush1.msra.mxu0 0.0
      %591 = vmatprep.subr.mxu0 0.0
      %592 = vmatpush1.msra.mxu0 0.0
      %593 = vmatprep.subr.mxu0 0.0
      %594 = vmatpush1.msra.mxu0 0.0
      %595 = vmatprep.subr.mxu0 0.0
      %596 = vmatpush1.msra.mxu0 0.0
      %597 = vmatprep.subr.mxu0 0.0
      %598 = vmatpush1.msra.mxu0 0.0
      %599 = vmatprep.subr.mxu0 0.0
      %600 = vmatpush1.msra.mxu0 0.0
      %601 = vmatprep.subr.mxu0 0.0
      %602 = vmatpush1.msra.mxu0 0.0
      %603 = vmatprep.subr.mxu0 0.0
      %604 = vmatpush1.msra.mxu0 0.0
      %605 = vmatprep.subr.mxu0 0.0
      %606 = vmatpush1.msra.mxu0 0.0
      %607 = vmatprep.subr.mxu0 0.0
      %608 = vmatpush1.msra.mxu0 0.0
      %609 = vmatprep.mubr.f32.mxu0 0.0
      %610 = vmatmul.mubr.f32.gmra.mrb[0].mxu0 %v274
      %v611 = vpop.f32.mrb[0].mxu0
      %v612 = vadd.f32 %v542, %v611
      %v613 = vpop.f32.mrb[0].mxu0
      %614 = vdwg.mxu0
      %v616 = vcombine.high %v612, %v612
      %v618 = vunpack.c.l.s4 1966171168
      %v619 = vunpack.c.0.s8 %v618
      %v620 = vlaneseq
      %v621 = vshrl.u32 %v620, 7
      %v622 = vsub.s32 %v619, %v621
      %v623 = vrot.slane %v612, %v622
      %v625 = vunpack.c.l.s4 1966171168
      %v626 = vunpack.c.0.s8 %v625
      %v627 = vlaneseq
      %v628 = vshrl.u32 %v627, 7
      %v629 = vsub.s32 %v626, %v628
      %v630 = vrot.slane %v616, %v629
      %v631 = vcombine.high %v623, %v623
      %v632 = vcombine.high %v630, %v630
      %v634 = vunpack.c.l.s4 1966171168
      %v635 = vunpack.c.0.s8 %v634
      %v636 = vlaneseq
      %v637 = vshrl.u32 %v636, 7
      %v638 = vsub.s32 %v635, %v637
      %v639 = vrot.slane %v623, %v638
      %v641 = vunpack.c.l.s4 1966171168
      %v642 = vunpack.c.0.s8 %v641
      %v643 = vlaneseq
      %v644 = vshrl.u32 %v643, 7
      %v645 = vsub.s32 %v642, %v644
      %v646 = vrot.slane %v630, %v645
      %v648 = vunpack.c.l.s4 1966171168
      %v649 = vunpack.c.0.s8 %v648
      %v650 = vlaneseq
      %v651 = vshrl.u32 %v650, 7
      %v652 = vsub.s32 %v649, %v651
      %v653 = vrot.slane %v631, %v652
      %v655 = vunpack.c.l.s4 1966171168
      %v656 = vunpack.c.0.s8 %v655
      %v657 = vlaneseq
      %v658 = vshrl.u32 %v657, 7
      %v659 = vsub.s32 %v656, %v658
      %v660 = vrot.slane %v632, %v659
      %v661 = vcombine.high %v639, %v639
      %v662 = vcombine.high %v646, %v646
      %v663 = vcombine.high %v653, %v653
      %v664 = vcombine.high %v660, %v660
      %v665 = vlaneseq
      %v666 = vshrl.u32 %v665, 7
      %v667 = vsub.s32 0, %v666
      %v668 = vrot.slane %v639, %v667
      %v669 = vlaneseq
      %v670 = vshrl.u32 %v669, 7
      %v671 = vsub.s32 0, %v670
      %v672 = vrot.slane %v653, %v671
      %v673 = vlaneseq
      %v674 = vshrl.u32 %v673, 7
      %v675 = vsub.s32 0, %v674
      %v676 = vrot.slane %v661, %v675
      %v677 = vlaneseq
      %v678 = vshrl.u32 %v677, 7
      %v679 = vsub.s32 0, %v678
      %v680 = vrot.slane %v663, %v679
      %v681 = vlaneseq
      %v682 = vshrl.u32 %v681, 7
      %v683 = vsub.s32 0, %v682
      %v684 = vrot.slane %v646, %v683
      %v685 = vlaneseq
      %v686 = vshrl.u32 %v685, 7
      %v687 = vsub.s32 0, %v686
      %v688 = vrot.slane %v660, %v687
      %v689 = vlaneseq
      %v690 = vshrl.u32 %v689, 7
      %v691 = vsub.s32 0, %v690
      %v692 = vrot.slane %v662, %v691
      %v693 = vlaneseq
      %v694 = vshrl.u32 %v693, 7
      %v695 = vsub.s32 0, %v694
      %v696 = vrot.slane %v664, %v695
      %v705 = vadd.f32 %v668, %v359
      %v706 = vadd.f32 %v672, %v359
      %v707 = vadd.f32 %v676, %v359
      %v708 = vadd.f32 %v680, %v359
      %v709 = vadd.f32 %v684, %v359
      %v710 = vadd.f32 %v688, %v359
      %v711 = vadd.f32 %v692, %v359
      %v712 = vadd.f32 %v696, %v359
      %v713 = vxor.u32 %v705, 2147483648
      %v714 = vxor.u32 %v706, 2147483648
      %v715 = vxor.u32 %v707, 2147483648
      %v716 = vxor.u32 %v708, 2147483648
      %v717 = vxor.u32 %v709, 2147483648
      %v718 = vxor.u32 %v710, 2147483648
      %v719 = vxor.u32 %v711, 2147483648
      %v720 = vxor.u32 %v712, 2147483648
      %v721 = vmul.f32 %v713, 1.442695
      %v722 = vpow.pop %v721
      %v723 = vmul.f32 %v714, 1.442695
      %v724 = vpow.pop %v723
      %v725 = vmul.f32 %v715, 1.442695
      %v726 = vpow.pop %v725
      %v727 = vmul.f32 %v716, 1.442695
      %v728 = vpow.pop %v727
      %v729 = vmul.f32 %v717, 1.442695
      %v730 = vpow.pop %v729
      %v731 = vmul.f32 %v718, 1.442695
      %v732 = vpow.pop %v731
      %v733 = vmul.f32 %v719, 1.442695
      %v734 = vpow.pop %v733
      %v735 = vmul.f32 %v720, 1.442695
      %v736 = vpow.pop %v735
      %v737 = vadd.f32 %v722, 1.0
      %v738 = vadd.f32 %v724, 1.0
      %v739 = vadd.f32 %v726, 1.0
      %v740 = vadd.f32 %v728, 1.0
      %v741 = vadd.f32 %v730, 1.0
      %v742 = vadd.f32 %v732, 1.0
      %v743 = vadd.f32 %v734, 1.0
      %v744 = vadd.f32 %v736, 1.0
      %v745 = vrcp.pop %v737
      %v746 = vmul.f32 1.0, %v745
      %v747 = vrcp.pop %v738
      %v748 = vmul.f32 1.0, %v747
      %v749 = vrcp.pop %v739
      %v750 = vmul.f32 1.0, %v749
      %v751 = vrcp.pop %v740
      %v752 = vmul.f32 1.0, %v751
      %v753 = vrcp.pop %v741
      %v754 = vmul.f32 1.0, %v753
      %v755 = vrcp.pop %v742
      %v756 = vmul.f32 1.0, %v755
      %v757 = vrcp.pop %v743
      %v758 = vmul.f32 1.0, %v757
      %v759 = vrcp.pop %v744
      %v760 = vmul.f32 1.0, %v759
      %v761 = vld [vmem:[%s6] sm:$0x1]
      %v763 = vlaneseq
      %v764 = vshrl.u32 %v763, 7
      %v765 = vsub.s32 0, %v764
      %v766 = vrot.slane %v761, %v765
      %v768 = vmul.f32 %v746, %v766
      %v769 = vmul.f32 %v748, %v766
      %v770 = vmul.f32 %v750, %v766
      %v771 = vmul.f32 %v752, %v766
      %v772 = vmul.f32 %v754, %v766
      %v773 = vmul.f32 %v756, %v766
      %v774 = vmul.f32 %v758, %v766
      %v775 = vmul.f32 %v760, %v766
      %776 = vadd.xlane.f32.xlu0 %v768
      %v777 = vpop.xlane.xlu0 %776
      %778 = vadd.xlane.f32.xlu0 %v769
      %v779 = vpop.xlane.xlu0 %778
      %780 = vadd.xlane.f32.xlu0 %v770
      %v781 = vpop.xlane.xlu0 %780
      %782 = vadd.xlane.f32.xlu0 %v771
      %v783 = vpop.xlane.xlu0 %782
      %784 = vadd.xlane.f32.xlu0 %v772
      %v785 = vpop.xlane.xlu0 %784
      %786 = vadd.xlane.f32.xlu0 %v773
      %v787 = vpop.xlane.xlu0 %786
      %788 = vadd.xlane.f32.xlu0 %v774
      %v789 = vpop.xlane.xlu0 %788
      %790 = vadd.xlane.f32.xlu0 %v775
      %v791 = vpop.xlane.xlu0 %790
      %v792 = vlaneseq
      %v793 = vshrl.u32 %v792, 7
      %v794 = vsub.s32 0, %v793
      %v795 = vrot.slane %v275, %v794
      %797 = vbcast.lane.b32.xlu0 %v795, 256
      %v798 = vpop.permute.xlu0 %797
      %v799 = vlaneseq
      %v800 = vshrl.u32 %v799, 7
      %v801 = vsub.s32 1, %v800
      %v802 = vrot.slane %v275, %v801
      %804 = vbcast.lane.b32.xlu0 %v802, 256
      %v805 = vpop.permute.xlu0 %804
      %v806 = vlaneseq
      %v807 = vshrl.u32 %v806, 7
      %v808 = vsub.s32 2, %v807
      %v809 = vrot.slane %v275, %v808
      %811 = vbcast.lane.b32.xlu0 %v809, 256
      %v812 = vpop.permute.xlu0 %811
      %v813 = vlaneseq
      %v814 = vshrl.u32 %v813, 7
      %v815 = vsub.s32 3, %v814
      %v816 = vrot.slane %v275, %v815
      %818 = vbcast.lane.b32.xlu0 %v816, 256
      %v819 = vpop.permute.xlu0 %818
      %v820 = vlaneseq
      %v821 = vshrl.u32 %v820, 7
      %v822 = vsub.s32 4, %v821
      %v823 = vrot.slane %v275, %v822
      %825 = vbcast.lane.b32.xlu0 %v823, 256
      %v826 = vpop.permute.xlu0 %825
      %v827 = vlaneseq
      %v828 = vshrl.u32 %v827, 7
      %v829 = vsub.s32 5, %v828
      %v830 = vrot.slane %v275, %v829
      %832 = vbcast.lane.b32.xlu0 %v830, 256
      %v833 = vpop.permute.xlu0 %832
      %v834 = vlaneseq
      %v835 = vshrl.u32 %v834, 7
      %v836 = vsub.s32 6, %v835
      %v837 = vrot.slane %v275, %v836
      %839 = vbcast.lane.b32.xlu0 %v837, 256
      %v840 = vpop.permute.xlu0 %839
      %v841 = vlaneseq
      %v842 = vshrl.u32 %v841, 7
      %v843 = vsub.s32 7, %v842
      %v844 = vrot.slane %v275, %v843
      %846 = vbcast.lane.b32.xlu0 %v844, 256
      %v847 = vpop.permute.xlu0 %846
      %v856 = vmul.f32 %v777, %v798
      %v857 = vmul.f32 %v779, %v805
      %v858 = vmul.f32 %v781, %v812
      %v859 = vmul.f32 %v783, %v819
      %v860 = vmul.f32 %v785, %v826
      %v861 = vmul.f32 %v787, %v833
      %v862 = vmul.f32 %v789, %v840
      %v863 = vmul.f32 %v791, %v847
      %872 = vset.pattern.permute.xlu0 0
      %873 = vperm.xlu0 %872, %v856
      %v874 = vpop.permute.xlu0 %873
      %875 = vset.pattern.permute.xlu0 0
      %876 = vperm.xlu0 %875, %v857
      %v877 = vpop.permute.xlu0 %876
      %878 = vset.pattern.permute.xlu0 0
      %879 = vperm.xlu0 %878, %v858
      %v880 = vpop.permute.xlu0 %879
      %881 = vset.pattern.permute.xlu0 0
      %882 = vperm.xlu0 %881, %v859
      %v883 = vpop.permute.xlu0 %882
      %884 = vset.pattern.permute.xlu0 0
      %885 = vperm.xlu0 %884, %v860
      %v886 = vpop.permute.xlu0 %885
      %887 = vset.pattern.permute.xlu0 0
      %888 = vperm.xlu0 %887, %v861
      %v889 = vpop.permute.xlu0 %888
      %890 = vset.pattern.permute.xlu0 0
      %891 = vperm.xlu0 %890, %v862
      %v892 = vpop.permute.xlu0 %891
      %893 = vset.pattern.permute.xlu0 0
      %894 = vperm.xlu0 %893, %v863
      %v895 = vpop.permute.xlu0 %894
      %v896 = vlaneseq
      %v897 = vand.u32 %v896, 127
      %v898 = vlaneseq
      %v899 = vshrl.u32 %v898, 7
      %v900 = vsub.s32 %v897, %v899
      %v901 = vrot.slane %v874, %v900
      %v902 = vlaneseq
      %v903 = vshrl.u32 %v902, 7
      %v904 = vsub.s32 %v897, %v903
      %v905 = vrot.slane %v877, %v904
      %v906 = vlaneseq
      %v907 = vshrl.u32 %v906, 7
      %v908 = vsub.s32 %v897, %v907
      %v909 = vrot.slane %v880, %v908
      %v910 = vlaneseq
      %v911 = vshrl.u32 %v910, 7
      %v912 = vsub.s32 %v897, %v911
      %v913 = vrot.slane %v883, %v912
      %v914 = vlaneseq
      %v915 = vshrl.u32 %v914, 7
      %v916 = vsub.s32 %v897, %v915
      %v917 = vrot.slane %v886, %v916
      %v918 = vlaneseq
      %v919 = vshrl.u32 %v918, 7
      %v920 = vsub.s32 %v897, %v919
      %v921 = vrot.slane %v889, %v920
      %v922 = vlaneseq
      %v923 = vshrl.u32 %v922, 7
      %v924 = vsub.s32 %v897, %v923
      %v925 = vrot.slane %v892, %v924
      %v926 = vlaneseq
      %v927 = vshrl.u32 %v926, 7
      %v928 = vsub.s32 %v897, %v927
      %v929 = vrot.slane %v895, %v928
      %vm930 = vcmask 1041409
      %v931 = vsel %vm930, %v905, %v901
      %vm932 = vcmask 1042434
      %v933 = vsel %vm932, %v909, %v931
      %vm934 = vcmask 1043459
      %v935 = vsel %vm934, %v913, %v933
      %vm936 = vcmask 1044484
      %v937 = vsel %vm936, %v917, %v935
      %vm938 = vcmask 1045509
      %v939 = vsel %vm938, %v921, %v937
      %vm940 = vcmask 1046534
      %v941 = vsel %vm940, %v925, %v939
      %vm942 = vcmask 1047559
      %v943 = vsel %vm942, %v929, %v941
      %v944 = vsel %vm378, %v943, 0
      %946 = vmatprep.subr.mxu0 0.0
      %947 = vmatpush1.msra.mxu0 %v274
      %948 = vmatprep.subr.mxu0 0.0
      %949 = vmatpush1.msra.mxu0 0.0
      %950 = vmatprep.subr.mxu0 0.0
      %951 = vmatpush1.msra.mxu0 0.0
      %952 = vmatprep.subr.mxu0 0.0
      %953 = vmatpush1.msra.mxu0 0.0
      %954 = vmatprep.subr.mxu0 0.0
      %955 = vmatpush1.msra.mxu0 0.0
      %956 = vmatprep.subr.mxu0 0.0
      %957 = vmatpush1.msra.mxu0 0.0
      %958 = vmatprep.subr.mxu0 0.0
      %959 = vmatpush1.msra.mxu0 0.0
      %960 = vmatprep.subr.mxu0 0.0
      %961 = vmatpush1.msra.mxu0 0.0
      %962 = vmatprep.subr.mxu0 0.0
      %963 = vmatpush1.msra.mxu0 0.0
      %964 = vmatprep.subr.mxu0 0.0
      %965 = vmatpush1.msra.mxu0 0.0
      %966 = vmatprep.subr.mxu0 0.0
      %967 = vmatpush1.msra.mxu0 0.0
      %968 = vmatprep.subr.mxu0 0.0
      %969 = vmatpush1.msra.mxu0 0.0
      %970 = vmatprep.subr.mxu0 0.0
      %971 = vmatpush1.msra.mxu0 0.0
      %972 = vmatprep.subr.mxu0 0.0
      %973 = vmatpush1.msra.mxu0 0.0
      %974 = vmatprep.subr.mxu0 0.0
      %975 = vmatpush1.msra.mxu0 0.0
      %976 = vmatprep.subr.mxu0 0.0
      %977 = vmatpush1.msra.mxu0 0.0
      %978 = vmatprep.subr.mxu0 0.0
      %979 = vmatpush1.msra.mxu0 0.0
      %980 = vmatprep.subr.mxu0 0.0
      %981 = vmatpush1.msra.mxu0 0.0
      %982 = vmatprep.subr.mxu0 0.0
      %983 = vmatpush1.msra.mxu0 0.0
      %984 = vmatprep.subr.mxu0 0.0
      %985 = vmatpush1.msra.mxu0 0.0
      %986 = vmatprep.subr.mxu0 0.0
      %987 = vmatpush1.msra.mxu0 0.0
      %988 = vmatprep.subr.mxu0 0.0
      %989 = vmatpush1.msra.mxu0 0.0
      %990 = vmatprep.subr.mxu0 0.0
      %991 = vmatpush1.msra.mxu0 0.0
      %992 = vmatprep.subr.mxu0 0.0
      %993 = vmatpush1.msra.mxu0 0.0
      %994 = vmatprep.subr.mxu0 0.0
      %995 = vmatpush1.msra.mxu0 0.0
      %996 = vmatprep.subr.mxu0 0.0
      %997 = vmatpush1.msra.mxu0 0.0
      %998 = vmatprep.subr.mxu0 0.0
      %999 = vmatpush1.msra.mxu0 0.0
      %1000 = vmatprep.subr.mxu0 0.0
      %1001 = vmatpush1.msra.mxu0 0.0
      %1002 = vmatprep.subr.mxu0 0.0
      %1003 = vmatpush1.msra.mxu0 0.0
      %1004 = vmatprep.subr.mxu0 0.0
      %1005 = vmatpush1.msra.mxu0 0.0
      %1006 = vmatprep.subr.mxu0 0.0
      %1007 = vmatpush1.msra.mxu0 0.0
      %1008 = vmatprep.subr.mxu0 0.0
      %1009 = vmatpush1.msra.mxu0 0.0
      %1010 = vmatprep.mubr.f32.mxu0 0.0
      %1011 = vmatmul.mubr.f32.gmra.mrb[0].mxu0 %v944
      %v1012 = vpop.f32.mrb[0].mxu0
      %v1013 = vadd.f32 0.0, %v1012
      %v1014 = vpop.f32.mrb[0].mxu0
      %1015 = vdwg.mxu0
      %1016 = vst [vmem:[%s273] sm:$0xff] %v1013
      %p1017 = scmp.lt.s32.totalorder %s18, 1
      %s1018 = scalar_select %p1017, %s18, 1
      %s1019 = smul.addr %s1018, 8
      %s1020 = scalar_lea.vmem %s7, %s1019
      // Predicated region
      $region49: #{attention_net_pallas.1} parent=47 // pred_check
        %p1021 = pneg %p188
      $region50: #{attention_net_pallas.1} parent=47 // pred_check_branch
        %1023 = sbr.rel (%p1021) target = $region52
      $region51: #{attention_net_pallas.1} parent=47 // pred_region
        _
      $region52: #{attention_net_pallas.1} parent=47 // pred_fallthru
        _
    $region48: #{attention_net_pallas.1} parent=5 // pred_fallthru
      _
    %p1024 = scmp.le.s32.totalorder 2, %s13
    // Predicated region
    $region53: #{attention_net_pallas.1} parent=5 // pred_check
      %p1025 = pneg %p1024
    $region54: #{attention_net_pallas.1} parent=5 // pred_check_branch
      %1027 = sbr.rel (%p1025) target = $region56
    $region55: #{attention_net_pallas.1} parent=5 // pred_region
      %s1028 = ssub.s32 %s13, 2
      // Predicated region
      $region57: #{attention_net_pallas.1} parent=55 // pred_check
        %p1029 = pneg %p194
      $region58: #{attention_net_pallas.1} parent=55 // pred_check_branch
        %1031 = sbr.rel (%p1029) target = $region60
      $region59: #{attention_net_pallas.1} parent=55 // pred_region
        %p1032 = scmp.lt.s32.totalorder %s19, 1
        %s1033 = scalar_select %p1032, %s19, 1
        %s1034 = smul.addr %s1033, 8
        %s1035 = scalar_lea.vmem %s7, %s1034
      $region60: #{attention_net_pallas.1} parent=55 // pred_fallthru
        _
    $region56: #{attention_net_pallas.1} parent=5 // pred_fallthru
      _
  $region6: #{attention_net_pallas.1} parent=0 // loop_footer
    %s17 = sadd.s32 1, %s13
  $region7: #{attention_net_pallas.1} parent=0 // loop_footer_branch
    %12 = sbr.rel target = $region3
  $region8: #{attention_net_pallas.1} parent=0 // loop_exit
    _

</llo_original>
